<compile_context>
chip_gen: v7x
topology: tpu7x:2x2x1
jax: 0.10.0
libtpu: 0.0.40
codegen_flags: <defaults>
</compile_context>

<pallas_src>
import jax
import jax.numpy as jnp
from jax import lax
from jax.experimental import pallas as pl
from jax.experimental.pallas import tpu as pltpu

EPS = 1e-5


def _ibn_kernel(x_ref, gamma_ref, beta_ref, mask_ref, o_ref):
    # x_ref: (N, C_TILE, HW).  mask_ref: (C_TILE, 1), 1.0 for IN channels,
    # 0.0 for BN channels.  gamma/beta: (C_TILE, 1) f32.
    x = x_ref[...]
    n, ct, hw = x.shape
    xf = x.astype(jnp.float32)  # no-op for f32 inputs; f32 math for bf16 inputs

    inv_hw = 1.0 / hw
    inv_nhw = 1.0 / (n * hw)

    # One-pass statistics over the lane (HW) axis.
    s1 = jnp.sum(xf, axis=-1, keepdims=True)         # (N, CT, 1)
    s2 = jnp.sum(xf * xf, axis=-1, keepdims=True)    # (N, CT, 1)

    # InstanceNorm stats: per (n, c).
    mu_in = s1 * inv_hw
    var_in = s2 * inv_hw - mu_in * mu_in

    # BatchNorm (training) stats: per c over (N, HW) -- a cheap further reduce
    # of the already-reduced (N, CT, 1) partial sums.
    mu_bn = jnp.sum(s1, axis=0, keepdims=True) * inv_nhw                  # (1, CT, 1)
    var_bn = jnp.sum(s2, axis=0, keepdims=True) * inv_nhw - mu_bn * mu_bn

    # Per-channel IN-vs-BN selection (tiny (N, CT, 1) arrays only).
    in_mask = (mask_ref[...] > 0.5)[None, :, :]       # (1, CT, 1) bool
    mu = jnp.where(in_mask, mu_in, mu_bn)             # (N, CT, 1)
    var = jnp.where(in_mask, var_in, var_bn)
    var = jnp.maximum(var, 0.0)  # guard one-pass variance against tiny negatives

    gamma = gamma_ref[...][None, :, :]                # (1, CT, 1)
    beta = beta_ref[...][None, :, :]

    # Fused affine: y = x * scale + shift (2 VALU ops/elem); rsqrt on the EUP.
    scale = gamma * lax.rsqrt(var + EPS)              # (N, CT, 1)
    shift = beta - mu * scale
    o_ref[...] = (xf * scale + shift).astype(o_ref.dtype)


def _vmem_capacity_bytes():
    try:
        cap = getattr(pltpu.get_tpu_info(), "vmem_capacity_bytes", None)
        if cap:
            return int(cap)
    except Exception:
        pass
    return 64 << 20  # conservative default (v7x has the smallest VMEM)


def _pick_c_tile(c, n, hw, itemsize, vmem_cap):
    """Channel tile for an (N, C_TILE, HW) block.

    - multiple of the packed sublane count for the dtype (8 f32 / 16 bf16 /
      32 int8) unless it equals C (full-extent dims are exempt from (8,128)),
    - big enough (~4 MiB input block, generation-aware) to amortize the
      ~0.35 us per-grid-step overhead,
    - small enough to leave >= 4 grid steps when possible (two v7x TensorCores
      + double-buffered pipeline).
    """
    sub = max(8, 32 // max(1, itemsize))
    cands = [t for t in range(sub, c + 1, sub) if c % t == 0]
    if not cands and sub > 8:
        cands = [t for t in range(8, c + 1, 8) if c % t == 0]
    if not cands:
        # TODO(synk): C not tileable on the sublane axis -> whole channel slab
        # as one block; fine at IBN's real sizes, but an extreme N*HW would
        # need a two-pass (stats then normalize) kernel instead.
        return c

    target = min(4 << 20, max(1 << 20, vmem_cap // 12))
    best = cands[0]
    for t in cands:  # ascending; take the largest tile that fits the target
        if n * t * hw * itemsize <= target:
            best = t
    while c // best < 4 and best > cands[0]:
        best = max(t for t in cands if t < best)
    return best


def ibn_forward(x, in_weight, in_bias, bn_weight, bn_bias):
    """IBN forward.  x: (N, C, H, W) float array. Returns (N, C, H, W)."""
    n, c, h, w = x.shape
    half = in_weight.shape[0]
    hw = h * w

    # Collapsing trailing spatial dims is a free reshape; HW lands on lanes.
    x_flat = x.reshape(n, c, hw)

    # Tiny per-channel parameter vectors, concatenated host-side (negligible).
    gamma = jnp.concatenate([in_weight, bn_weight]).astype(jnp.float32).reshape(c, 1)
    beta = jnp.concatenate([in_bias, bn_bias]).astype(jnp.float32).reshape(c, 1)
    in_mask = (jnp.arange(c) < half).astype(jnp.float32).reshape(c, 1)

    itemsize = jnp.dtype(x.dtype).itemsize
    vmem_cap = _vmem_capacity_bytes()
    c_tile = _pick_c_tile(c, n, hw, itemsize, vmem_cap)

    # Explicit VMEM plan: double-buffered in + out blocks plus ~2 f32 block
    # temporaries, clamped well below physical capacity (64 MiB on v7x).
    block_in = n * c_tile * hw * itemsize
    block_f32 = n * c_tile * hw * 4
    plan = 4 * block_in + 2 * block_f32 + (2 << 20)
    vmem_limit = int(min(vmem_cap * 3 // 4, max(plan, 16 << 20)))

    cost = pl.CostEstimate(
        flops=6 * n * c * hw,
        transcendentals=n * c,
        bytes_accessed=2 * n * c * hw * itemsize + 3 * c * 4,
    )

    y = pl.pallas_call(
        _ibn_kernel,
        out_shape=jax.ShapeDtypeStruct((n, c, hw), x.dtype),
        grid=(c // c_tile,),
        in_specs=[
            pl.BlockSpec((n, c_tile, hw), lambda ci: (0, ci, 0)),
            pl.BlockSpec((c_tile, 1), lambda ci: (ci, 0)),
            pl.BlockSpec((c_tile, 1), lambda ci: (ci, 0)),
            pl.BlockSpec((c_tile, 1), lambda ci: (ci, 0)),
        ],
        out_specs=pl.BlockSpec((n, c_tile, hw), lambda ci: (0, ci, 0)),
        compiler_params=pltpu.CompilerParams(
            dimension_semantics=("parallel",),
            vmem_limit_bytes=vmem_limit,
        ),
        cost_estimate=cost,
    )(x_flat, gamma, beta, in_mask)

    return y.reshape(n, c, h, w)


def _ibn_reference(x, in_weight, in_bias, bn_weight, bn_bias):
    half = in_weight.shape[0]
    x1, x2 = x[:, :half], x[:, half:]
    m1 = jnp.mean(x1, axis=(2, 3), keepdims=True)
    v1 = jnp.mean((x1 - m1) ** 2, axis=(2, 3), keepdims=True)
    y1 = (x1 - m1) / jnp.sqrt(v1 + EPS)
    y1 = y1 * in_weight[None, :, None, None] + in_bias[None, :, None, None]
    m2 = jnp.mean(x2, axis=(0, 2, 3), keepdims=True)
    v2 = jnp.mean((x2 - m2) ** 2, axis=(0, 2, 3), keepdims=True)
    y2 = (x2 - m2) / jnp.sqrt(v2 + EPS)
    y2 = y2 * bn_weight[None, :, None, None] + bn_bias[None, :, None, None]
    return jnp.concatenate([y1, y2], axis=1)


if __name__ == "__main__":
    planes = 4
    half1 = planes // 2
    half2 = planes - half1
    n, h, w = 2, 16, 16

    key = jax.random.PRNGKey(0)
    kx, kiw, kib, kbw, kbb = jax.random.split(key, 5)

    x = jax.random.normal(kx, (n, planes, h, w), dtype=jnp.float32)
    # Deterministic, non-trivial affine parameters (PyTorch default is ones/zeros).
    in_weight = 1.0 + 0.1 * jax.random.normal(kiw, (half1,), dtype=jnp.float32)
    in_bias = 0.1 * jax.random.normal(kib, (half1,), dtype=jnp.float32)
    bn_weight = 1.0 + 0.1 * jax.random.normal(kbw, (half2,), dtype=jnp.float32)
    bn_bias = 0.1 * jax.random.normal(kbb, (half2,), dtype=jnp.float32)

    out = ibn_forward(x, in_weight, in_bias, bn_weight, bn_bias)
    out = jax.block_until_ready(out)

    ref = _ibn_reference(x, in_weight, in_bias, bn_weight, bn_bias)
    assert out.shape == (n, planes, h, w)
    assert jnp.allclose(out, ref, atol=1e-4, rtol=1e-4)

    print("KERNEL_OK")
</pallas_src>

<mosaic_0001>
module attributes {stable_mosaic.version = 11 : i64} {
  func.func @_ibn_kernel(%arg0: i32, %arg1: memref<2x4x256xf32, #tpu.memory_space<vmem>>, %arg2: memref<4x1xf32, #tpu.memory_space<vmem>>, %arg3: memref<4x1xf32, #tpu.memory_space<vmem>>, %arg4: memref<4x1xf32, #tpu.memory_space<vmem>>, %arg5: memref<2x4x256xf32, #tpu.memory_space<vmem>>) attributes {dimension_semantics = [#tpu.dimension_semantics<parallel>], iteration_bounds = array<i64: 1>, scalar_prefetch = 0 : i64, scratch_operands = 0 : i64, tpu.core_type = #tpu.core_type<tc>, window_params = [{transform_indices = @transform_0, window_bounds = array<i64: 2, 4, 256>}, {transform_indices = @transform_1, window_bounds = array<i64: 4, 1>}, {transform_indices = @transform_2, window_bounds = array<i64: 4, 1>}, {transform_indices = @transform_3, window_bounds = array<i64: 4, 1>}, {transform_indices = @transform_4, window_bounds = array<i64: 2, 4, 256>}]} {
    %c0 = arith.constant 0 : index
    %c0_0 = arith.constant 0 : index
    %c0_1 = arith.constant 0 : index
    %0 = vector.load %arg1[%c0, %c0_0, %c0_1] : memref<2x4x256xf32, #tpu.memory_space<vmem>>, vector<2x4x256xf32>
    %cst = arith.constant dense<0.000000e+00> : vector<2x4xf32>
    %1 = vector.multi_reduction <add>, %0, %cst [2] : vector<2x4x256xf32> to vector<2x4xf32>
    %2 = vector.shape_cast %1 : vector<2x4xf32> to vector<2x4x1xf32>
    %3 = arith.mulf %0, %0 : vector<2x4x256xf32>
    %cst_2 = arith.constant dense<0.000000e+00> : vector<2x4xf32>
    %4 = vector.multi_reduction <add>, %3, %cst_2 [2] : vector<2x4x256xf32> to vector<2x4xf32>
    %5 = vector.shape_cast %4 : vector<2x4xf32> to vector<2x4x1xf32>
    %cst_3 = arith.constant 3.906250e-03 : f32
    %6 = vector.broadcast %cst_3 : f32 to vector<2x4x1xf32>
    %7 = arith.mulf %2, %6 : vector<2x4x1xf32>
    %cst_4 = arith.constant 3.906250e-03 : f32
    %8 = vector.broadcast %cst_4 : f32 to vector<2x4x1xf32>
    %9 = arith.mulf %5, %8 : vector<2x4x1xf32>
    %10 = arith.mulf %7, %7 : vector<2x4x1xf32>
    %11 = arith.subf %9, %10 : vector<2x4x1xf32>
    %cst_5 = arith.constant dense<0.000000e+00> : vector<4x1xf32>
    %12 = vector.multi_reduction <add>, %2, %cst_5 [0] : vector<2x4x1xf32> to vector<4x1xf32>
    %13 = vector.shape_cast %12 : vector<4x1xf32> to vector<1x4x1xf32>
    %cst_6 = arith.constant 0.001953125 : f32
    %14 = vector.broadcast %cst_6 : f32 to vector<1x4x1xf32>
    %15 = arith.mulf %13, %14 : vector<1x4x1xf32>
    %cst_7 = arith.constant dense<0.000000e+00> : vector<4x1xf32>
    %16 = vector.multi_reduction <add>, %5, %cst_7 [0] : vector<2x4x1xf32> to vector<4x1xf32>
    %17 = vector.shape_cast %16 : vector<4x1xf32> to vector<1x4x1xf32>
    %cst_8 = arith.constant 0.001953125 : f32
    %18 = vector.broadcast %cst_8 : f32 to vector<1x4x1xf32>
    %19 = arith.mulf %17, %18 : vector<1x4x1xf32>
    %20 = arith.mulf %15, %15 : vector<1x4x1xf32>
    %21 = arith.subf %19, %20 : vector<1x4x1xf32>
    %c0_9 = arith.constant 0 : index
    %c0_10 = arith.constant 0 : index
    %22 = vector.load %arg4[%c0_9, %c0_10] : memref<4x1xf32, #tpu.memory_space<vmem>>, vector<4x1xf32>
    %cst_11 = arith.constant 5.000000e-01 : f32
    %23 = vector.broadcast %cst_11 : f32 to vector<4x1xf32>
    %24 = arith.cmpf ogt, %22, %23 : vector<4x1xf32>
    %25 = vector.shape_cast %24 : vector<4x1xi1> to vector<1x4x1xi1>
    %26 = vector.shape_cast %25 : vector<1x4x1xi1> to vector<1x4x1xi1>
    %27 = vector.broadcast %26 : vector<1x4x1xi1> to vector<2x4x1xi1>
    %28 = vector.shape_cast %15 : vector<1x4x1xf32> to vector<1x4x1xf32>
    %29 = vector.broadcast %28 : vector<1x4x1xf32> to vector<2x4x1xf32>
    %30 = arith.select %27, %7, %29 : vector<2x4x1xi1>, vector<2x4x1xf32>
    %31 = vector.shape_cast %25 : vector<1x4x1xi1> to vector<1x4x1xi1>
    %32 = vector.broadcast %31 : vector<1x4x1xi1> to vector<2x4x1xi1>
    %33 = vector.shape_cast %21 : vector<1x4x1xf32> to vector<1x4x1xf32>
    %34 = vector.broadcast %33 : vector<1x4x1xf32> to vector<2x4x1xf32>
    %35 = arith.select %32, %11, %34 : vector<2x4x1xi1>, vector<2x4x1xf32>
    %cst_12 = arith.constant 0.000000e+00 : f32
    %36 = vector.broadcast %cst_12 : f32 to vector<2x4x1xf32>
    %37 = arith.maximumf %35, %36 : vector<2x4x1xf32>
    %c0_13 = arith.constant 0 : index
    %c0_14 = arith.constant 0 : index
    %38 = vector.load %arg2[%c0_13, %c0_14] : memref<4x1xf32, #tpu.memory_space<vmem>>, vector<4x1xf32>
    %39 = vector.shape_cast %38 : vector<4x1xf32> to vector<1x4x1xf32>
    %c0_15 = arith.constant 0 : index
    %c0_16 = arith.constant 0 : index
    %40 = vector.load %arg3[%c0_15, %c0_16] : memref<4x1xf32, #tpu.memory_space<vmem>>, vector<4x1xf32>
    %41 = vector.shape_cast %40 : vector<4x1xf32> to vector<1x4x1xf32>
    %cst_17 = arith.constant 9.99999974E-6 : f32
    %42 = vector.broadcast %cst_17 : f32 to vector<2x4x1xf32>
    %43 = arith.addf %37, %42 : vector<2x4x1xf32>
    %44 = math.rsqrt %43 : vector<2x4x1xf32>
    %45 = vector.broadcast %39 : vector<1x4x1xf32> to vector<2x4x1xf32>
    %46 = arith.mulf %45, %44 : vector<2x4x1xf32>
    %47 = arith.mulf %30, %46 : vector<2x4x1xf32>
    %48 = vector.broadcast %41 : vector<1x4x1xf32> to vector<2x4x1xf32>
    %49 = arith.subf %48, %47 : vector<2x4x1xf32>
    %50 = vector.broadcast %46 : vector<2x4x1xf32> to vector<2x4x256xf32>
    %51 = arith.mulf %0, %50 : vector<2x4x256xf32>
    %52 = vector.broadcast %49 : vector<2x4x1xf32> to vector<2x4x256xf32>
    %53 = arith.addf %51, %52 : vector<2x4x256xf32>
    %c0_18 = arith.constant 0 : index
    %c0_19 = arith.constant 0 : index
    %c0_20 = arith.constant 0 : index
    %54 = vector.load %arg5[%c0_18, %c0_19, %c0_20] : memref<2x4x256xf32, #tpu.memory_space<vmem>>, vector<2x4x256xf32>
    tpu.vector_store %arg5[%c0_18, %c0_19, %c0_20], %53 {strides = array<i32>} : memref<2x4x256xf32, #tpu.memory_space<vmem>>, vector<2x4x256xf32>,
    return
  }
  func.func @transform_0(%arg0: i32) -> (i32, i32, i32) {
    %c0_i32 = arith.constant 0 : i32
    %c0_i32_0 = arith.constant 0 : i32
    %c0_i32_1 = arith.constant 0 : i32
    return %c0_i32, %arg0, %c0_i32_0 : i32, i32, i32
  }
  func.func @transform_1(%arg0: i32) -> (i32, i32) {
    %c0_i32 = arith.constant 0 : i32
    %c0_i32_0 = arith.constant 0 : i32
    return %arg0, %c0_i32 : i32, i32
  }
  func.func @transform_2(%arg0: i32) -> (i32, i32) {
    %c0_i32 = arith.constant 0 : i32
    %c0_i32_0 = arith.constant 0 : i32
    return %arg0, %c0_i32 : i32, i32
  }
  func.func @transform_3(%arg0: i32) -> (i32, i32) {
    %c0_i32 = arith.constant 0 : i32
    %c0_i32_0 = arith.constant 0 : i32
    return %arg0, %c0_i32 : i32, i32
  }
  func.func @transform_4(%arg0: i32) -> (i32, i32, i32) {
    %c0_i32 = arith.constant 0 : i32
    %c0_i32_0 = arith.constant 0 : i32
    %c0_i32_1 = arith.constant 0 : i32
    return %c0_i32, %arg0, %c0_i32_0 : i32, i32, i32
  }
}

</mosaic_0001>

<llo_original>
// kernel: tpu_custom_call.1
$region0: #{tpu_custom_call.1}
  #allocation0 [shape = 'u32[]', space=smem, size = 0x4, offset = 0x4, fixed_abs, tag = 'smem constant byte address 0x4 - core index']
  #allocation1 [shape = 'u32[144,128]{1,0:T(1,128)}', space=vmem, size = 0x12000, scoped, tag = 'internal scratch']
  %s0 = inlined_call_operand.hbm [shape: f32[2,4,256], index: 0, kind: input, shape index: {}]
  %s1 = inlined_call_operand.vmem [shape: f32[4,1], index: 1, kind: input, shape index: {}]
  %s2 = inlined_call_operand.vmem [shape: f32[4,1], index: 2, kind: input, shape index: {}]
  %s3 = inlined_call_operand.vmem [shape: f32[4,1], index: 3, kind: input, shape index: {}]
  %s4 = inlined_call_operand.hbm [shape: f32[2,4,256], index: 4, kind: output, shape index: {}]
  %s5 = sld [smem:[#allocation0]]
  $region30: #{tpu_custom_call.1} parent=0
    _
  %s7 = ssub.s32 1, %s5
  %s8 = scalar_select 0, %s7, %s5
  $region1: #{tpu_custom_call.1} parent=0
    #allocation2 [shape = 'u8[8192]{0}', space=vmem, size = 0x2000, scoped, tag = 'input window, operand 0, single buffered']
    #allocation3 [shape = 's32[1]{0}', space=sflag, size = 0x4, scoped, tag = 'scoped memory for tpu_custom_call.1']
    #allocation4 [shape = 's32[1]{0}', space=sflag, size = 0x4, scoped, tag = 'scoped memory for tpu_custom_call.1']
    #allocation5 [shape = 'u8[8192]{0}', space=vmem, size = 0x2000, scoped, tag = 'output window, operand 0, single buffered']
    %9 = vsyncpa [#allocation3], 0
    %10 = vsyncpa [#allocation4], 0
    // Predicated region
    $region2: #{tpu_custom_call.1} parent=1 // pred_check
      _
    $region3: #{tpu_custom_call.1} parent=1 // pred_check_branch
      %12 = sbr.rel (0) target = $region5
    $region4: #{tpu_custom_call.1} parent=1 // pred_region
      %s14 = ssub.s32 256, 256
      %15 = vsyncadd [#allocation3], %s14
      %s16 = sshll.u32 [#allocation2], 4
      %s17 = int_to_ptr.vmem [resolvable:$true] %s16
      %22 = dma.hbm_to_vmem [thread:$0]  %s0, 256, %s17, [#allocation3], 128, 128, 8
    $region5: #{tpu_custom_call.1} parent=1 // pred_fallthru
      _
    // Predicated region
    $region6: #{tpu_custom_call.1} parent=1 // pred_check
      _
    $region7: #{tpu_custom_call.1} parent=1 // pred_check_branch
      %24 = sbr.rel (0) target = $region9
    $region8: #{tpu_custom_call.1} parent=1 // pred_region
      _
    $region9: #{tpu_custom_call.1} parent=1 // pred_fallthru
      _
    // Predicated region
    $region10: #{tpu_custom_call.1} parent=1 // pred_check
      _
    $region11: #{tpu_custom_call.1} parent=1 // pred_check_branch
      %26 = sbr.rel (0) target = $region13
    $region12: #{tpu_custom_call.1} parent=1 // pred_region
      _
    $region13: #{tpu_custom_call.1} parent=1 // pred_fallthru
      _
    // Predicated region
    $region14: #{tpu_custom_call.1} parent=1 // pred_check
      _
    $region15: #{tpu_custom_call.1} parent=1 // pred_check_branch
      %28 = sbr.rel (0) target = $region17
    $region16: #{tpu_custom_call.1} parent=1 // pred_region
      _
    $region17: #{tpu_custom_call.1} parent=1 // pred_fallthru
      _
    // Predicated region
    $region18: #{tpu_custom_call.1} parent=1 // pred_check
      _
    $region19: #{tpu_custom_call.1} parent=1 // pred_check_branch
      %30 = sbr.rel (0) target = $region21
    $region20: #{tpu_custom_call.1} parent=1 // pred_region
      %31 = dma.done [#allocation3], 256
    $region21: #{tpu_custom_call.1} parent=1 // pred_fallthru
      _
    %v32 = vld [vmem:[#allocation2] sm:$0xff]
    %v33 = vld [vmem:[#allocation2 + $0x8] sm:$0xff]
    %v36 = vcombine.high %v32, %v32
    %v37 = vcombine.high %v33, %v33
    %vm40 = vcmask 1043456
    %v41 = vsel %vm40, %v32, 0.0
    %v42 = vsel %vm40, %v36, 0.0
    %v43 = vadd.f32 %v41, %v42
    %44 = vadd.xlane.f32.xlu0 %v43
    %v45 = vpop.xlane.xlu0 %44
    %v46 = vsel %vm40, %v33, 0.0
    %v47 = vsel %vm40, %v37, 0.0
    %v48 = vadd.f32 %v46, %v47
    %49 = vadd.xlane.f32.xlu0 %v48
    %v50 = vpop.xlane.xlu0 %49
    %v51 = vmul.f32 %v32, %v32
    %v52 = vmul.f32 %v33, %v33
    %v55 = vcombine.high %v51, %v51
    %v56 = vcombine.high %v52, %v52
    %v59 = vsel %vm40, %v51, 0.0
    %v60 = vsel %vm40, %v55, 0.0
    %v61 = vadd.f32 %v59, %v60
    %62 = vadd.xlane.f32.xlu0 %v61
    %v63 = vpop.xlane.xlu0 %62
    %v64 = vsel %vm40, %v52, 0.0
    %v65 = vsel %vm40, %v56, 0.0
    %v66 = vadd.f32 %v64, %v65
    %67 = vadd.xlane.f32.xlu0 %v66
    %v68 = vpop.xlane.xlu0 %67
    %v69 = vmul.f32 %v45, 0.00390625
    %v70 = vmul.f32 %v50, 0.00390625
    %v71 = vmul.f32 %v63, 0.00390625
    %v72 = vmul.f32 %v68, 0.00390625
    %v73 = vmul.f32 %v69, %v69
    %v74 = vmul.f32 %v70, %v70
    %v75 = vsub.f32 %v71, %v73
    %v76 = vsub.f32 %v72, %v74
    %v77 = vsel %vm40, %v45, 0.0
    %v78 = vsel %vm40, %v50, 0.0
    %v79 = vadd.f32 %v77, %v78
    %v80 = vmul.f32 %v79, 0.001953125
    %v81 = vsel %vm40, %v63, 0.0
    %v82 = vsel %vm40, %v68, 0.0
    %v83 = vadd.f32 %v81, %v82
    %v84 = vmul.f32 %v83, 0.001953125
    %v85 = vmul.f32 %v80, %v80
    %v86 = vsub.f32 %v84, %v85
    %v87 = vld [vmem:[%s3] sm:$0xf]
    %vm88 = vcmp.gt.f32.partialorder %v87, 0.5
    %v89 = vsel %vm88, 1, 0
    %vm90 = vcmp.eq.s32.totalorder %v89, 1
    %v91 = vsel %vm90, %v69, %v80
    %v92 = vsel %vm90, %v70, %v80
    %v93 = vsel %vm90, %v75, %v86
    %v94 = vsel %vm90, %v76, %v86
    %v95 = vmax.f32 %v93, 0.0
    %v96 = vmax.f32 %v94, 0.0
    %v97 = vld [vmem:[%s1] sm:$0xf]
    %v98 = vld [vmem:[%s2] sm:$0xf]
    %v99 = vadd.f32 %v95, 1e-05
    %v100 = vadd.f32 %v96, 1e-05
    %v101 = vrsqrt.pop %v99
    %v102 = vrsqrt.pop %v100
    %v103 = vmul.f32 %v97, %v101
    %v104 = vmul.f32 %v97, %v102
    %v105 = vmul.f32 %v91, %v103
    %v106 = vmul.f32 %v92, %v104
    %v107 = vsub.f32 %v98, %v105
    %v108 = vsub.f32 %v98, %v106
    %110 = vset.pattern.permute.xlu0 0
    %111 = vperm.xlu0 %110, %v103
    %v112 = vpop.permute.xlu0 %111
    %114 = vset.pattern.permute.xlu0 0
    %115 = vperm.xlu0 %114, %v104
    %v116 = vpop.permute.xlu0 %115
    %v118 = vunpack.c.l.s4 839922192
    %v119 = vunpack.c.0.s8 %v118
    %v120 = vlaneseq
    %v121 = vshrl.u32 %v120, 7
    %v122 = vsub.s32 %v119, %v121
    %v123 = vrot.slane %v112, %v122
    %v125 = vunpack.c.l.s4 839922192
    %v126 = vunpack.c.0.s8 %v125
    %v127 = vlaneseq
    %v128 = vshrl.u32 %v127, 7
    %v129 = vsub.s32 %v126, %v128
    %v130 = vrot.slane %v116, %v129
    %v133 = vmul.f32 %v32, %v123
    %v134 = vmul.f32 %v33, %v130
    %136 = vset.pattern.permute.xlu0 0
    %137 = vperm.xlu0 %136, %v107
    %v138 = vpop.permute.xlu0 %137
    %140 = vset.pattern.permute.xlu0 0
    %141 = vperm.xlu0 %140, %v108
    %v142 = vpop.permute.xlu0 %141
    %v144 = vunpack.c.l.s4 839922192
    %v145 = vunpack.c.0.s8 %v144
    %v146 = vlaneseq
    %v147 = vshrl.u32 %v146, 7
    %v148 = vsub.s32 %v145, %v147
    %v149 = vrot.slane %v138, %v148
    %v151 = vunpack.c.l.s4 839922192
    %v152 = vunpack.c.0.s8 %v151
    %v153 = vlaneseq
    %v154 = vshrl.u32 %v153, 7
    %v155 = vsub.s32 %v152, %v154
    %v156 = vrot.slane %v142, %v155
    %v159 = vadd.f32 %v133, %v149
    %v160 = vadd.f32 %v134, %v156
    %161 = vst [vmem:[#allocation5] sm:$0xff] %v159
    %162 = vst [vmem:[#allocation5 + $0x8] sm:$0xff] %v160
    // Predicated region
    $region22: #{tpu_custom_call.1} parent=1 // pred_check
      _
    $region23: #{tpu_custom_call.1} parent=1 // pred_check_branch
      %164 = sbr.rel (0) target = $region25
    $region24: #{tpu_custom_call.1} parent=1 // pred_region
      %s166 = ssub.s32 256, 256
      %167 = vsyncadd [#allocation4], %s166
      %s168 = sshll.u32 [#allocation5], 4
      %s169 = int_to_ptr.vmem [resolvable:$true] %s168
      %174 = dma.vmem_to_hbm [thread:$0]  %s169, 256, %s4, [#allocation4], 128, 128, 8
    $region25: #{tpu_custom_call.1} parent=1 // pred_fallthru
      _
    // Predicated region
    $region26: #{tpu_custom_call.1} parent=1 // pred_check
      _
    $region27: #{tpu_custom_call.1} parent=1 // pred_check_branch
      %176 = sbr.rel (0) target = $region29
    $region28: #{tpu_custom_call.1} parent=1 // pred_region
      %177 = dma.done [#allocation4], 256
    $region29: #{tpu_custom_call.1} parent=1 // pred_fallthru
      _
    %178 = vsyncpa [#allocation3], 1
    %179 = vsyncpa [#allocation4], 1

</llo_original>
